<compile_context>
chip_gen: v7x
topology: tpu7x:2x2x1
jax: 0.10.0
libtpu: 0.0.40
codegen_flags: <defaults>
</compile_context>

<pallas_src>
import math

import jax
import jax.numpy as jnp
from jax import lax
from jax.experimental import pallas as pl
from jax.experimental.pallas import tpu as pltpu


def _xlogy(v: float) -> float:
    """Python-level v*log(v) with the 0*log(0) = 0 convention."""
    return 0.0 if v <= 0.0 else v * math.log(v)


def _round_up(a: int, b: int) -> int:
    return (a + b - 1) // b * b


def _choose_tiles(n: int, v: int, itemsize: int,
                  block_budget_bytes: int, chunk_budget_bytes: int):
    """Return (tile_n, chunk) row counts.

    tile_n: rows per DMA block (byte-budgeted, multiple of `chunk`).
    chunk:  rows per in-kernel compute chunk (keeps f32 temporaries small).
    """
    v_pad = _round_up(v, 128)
    # Compute chunk: keep each f32 (chunk, V) temporary around chunk_budget bytes.
    chunk = chunk_budget_bytes // (v_pad * 4)
    chunk = max(8, min(512, chunk))
    chunk -= chunk % 8
    if n <= chunk:
        # Whole problem fits a single full-dim block (legal even if n % 8 != 0).
        return n, n
    # DMA block: x rows + lane-padded (tile_n, 1) int32 target rows (512 B each).
    rows = block_budget_bytes // (v_pad * itemsize + 512)
    rows = max(chunk, min(rows, 8192, (n // chunk) * chunk))
    rows -= rows % chunk
    return rows, chunk


def label_smoothing_loss(x, target, size, smoothing=0.0,
                         block_budget_bytes=6 * 1024 * 1024,
                         chunk_budget_bytes=512 * 1024):
    """Scalar KLDiv(sum) loss between log-probs x and the smoothed target dist."""
    assert x.ndim == 2 and x.shape[1] == size
    N, V = x.shape

    confidence = 1.0 - smoothing
    fill = smoothing / (size - 2)

    # Entropy term of the smoothed distribution (trace-time Python constant).
    C = N * (_xlogy(confidence) + (V - 1) * _xlogy(fill))

    itemsize = jnp.dtype(x.dtype).itemsize
    v_pad = _round_up(V, 128)
    tile_n, chunk = _choose_tiles(N, V, itemsize,
                                  block_budget_bytes, chunk_budget_bytes)
    n_chunks = tile_n // chunk                  # exact by construction
    acc_rows = 8 if chunk % 8 == 0 else 1       # acc_rows == 1 only when tile_n == N

    n_blocks = pl.cdiv(N, tile_n)
    num_cores = 2 if n_blocks >= 2 else 1       # engage both v7x TCs; no-op on 1-TC chips
    n_steps = pl.cdiv(n_blocks, num_cores)
    # Mask needed if the last block is ragged or a core gets a duplicated block.
    needs_mask = (n_blocks * tile_n != N) or (num_cores * n_steps != n_blocks)

    tgt_col = target.astype(jnp.int32).reshape(N, 1)

    def block_index(p, s):
        # Clamp so no DMA starts past the end of x/target; rows belonging to a
        # duplicated / overhanging block are zeroed in-kernel by the row mask.
        return jnp.minimum(p * n_steps + s, n_blocks - 1)

    def kernel(x_ref, tgt_ref, out_ref):
        p = pl.program_id(0)
        s = pl.program_id(1)

        @pl.when(s == 0)
        def _():
            out_ref[...] = jnp.zeros_like(out_ref)

        # UNclamped global first row of this block (used for the validity mask).
        base_row = (p * n_steps + s) * tile_n

        def chunk_body(r0):
            xt = x_ref[pl.ds(r0, chunk), :].astype(jnp.float32)      # (chunk, V)
            tg = tgt_ref[pl.ds(r0, chunk), :]                        # (chunk, 1) int32
            cols = lax.broadcasted_iota(jnp.int32, (chunk, V), 1)
            # true_dist takes only two values: confidence on the target column,
            # fill elsewhere (trace-time constants -> pure VPU compare + select).
            prod = jnp.where(cols == tg, confidence, fill) * xt
            if needs_mask:
                rows = (lax.broadcasted_iota(jnp.int32, (chunk, 1), 0)
                        + (base_row + r0))
                prod = jnp.where(rows < N, prod, 0.0)                # drop OOB rows
            if acc_rows == 8:
                # Sublane-group partial sums: pure VALU adds into the resident
                # (8, V) output block; no per-step XLU reduce.
                out_ref[...] += prod.reshape(chunk // 8, 8, V).sum(axis=0)
            else:
                out_ref[...] += jnp.sum(prod, axis=0, keepdims=True)

        if n_chunks == 1:
            chunk_body(0)
        else:
            @pl.loop(0, n_chunks)
            def _(c):
                chunk_body(pl.multiple_of(c * chunk, chunk))

    # Explicit VMEM budget: double-buffered x + target blocks, the output block,
    # plus headroom for the chunk-sized f32 elementwise temporaries.
    x_block_bytes = tile_n * v_pad * itemsize
    tgt_block_bytes = tile_n * 128 * 4          # (tile_n, 1) int32 lane-pads to 128
    out_block_bytes = acc_rows * v_pad * 4
    temp_bytes = 6 * chunk * v_pad * 4
    vmem_limit = (2 * (x_block_bytes + tgt_block_bytes)
                  + 2 * out_block_bytes + temp_bytes + (2 << 20))
    vmem_limit = int(min(vmem_limit, 64 * 1024 * 1024))

    cost = pl.CostEstimate(
        flops=5 * N * V,
        transcendentals=0,
        bytes_accessed=N * V * itemsize + N * 4 + num_cores * acc_rows * V * 4,
    )

    partials = pl.pallas_call(
        kernel,
        out_shape=jax.ShapeDtypeStruct((num_cores * acc_rows, V), jnp.float32),
        grid_spec=pltpu.PrefetchScalarGridSpec(
            num_scalar_prefetch=0,
            grid=(num_cores, n_steps),
            in_specs=[
                pl.BlockSpec((tile_n, V), lambda p, s: (block_index(p, s), 0)),
                pl.BlockSpec((tile_n, 1), lambda p, s: (block_index(p, s), 0)),
            ],
            out_specs=pl.BlockSpec((acc_rows, V), lambda p, s: (p, 0)),
        ),
        compiler_params=pltpu.CompilerParams(
            dimension_semantics=("parallel", "arbitrary"),
            vmem_limit_bytes=vmem_limit,
        ),
        cost_estimate=cost,
    )(x, tgt_col)

    # Final cross-lane/sublane + cross-core reduction of the tiny partial array.
    s_total = jnp.sum(partials, dtype=jnp.float32)
    return jnp.float32(C) - s_total


def label_smoothing_ref(x, target, size, smoothing):
    """Pure-JAX reference of the PyTorch forward."""
    N, V = x.shape
    confidence = 1.0 - smoothing
    fill = smoothing / (size - 2)
    cols = jnp.arange(V)[None, :]
    true_dist = jnp.where(cols == target[:, None], confidence, fill)
    log_td = jnp.log(jnp.maximum(true_dist, 1e-30))
    term = jnp.where(true_dist > 0.0, true_dist * (log_td - x), 0.0)
    return jnp.sum(term.astype(jnp.float32))


if __name__ == "__main__":
    key = jax.random.PRNGKey(0)
    k1, k2, k3, k4, k5, k6 = jax.random.split(key, 6)

    # Case 1: rows a multiple of 8, single block, single core.
    N1, SIZE1, SM1 = 16, 128, 0.1
    x1 = jax.nn.log_softmax(jax.random.normal(k1, (N1, SIZE1), jnp.float32), axis=-1)
    t1 = jax.random.randint(k2, (N1,), 0, SIZE1, dtype=jnp.int32)
    loss1 = jax.block_until_ready(label_smoothing_loss(x1, t1, SIZE1, SM1))
    ref1 = label_smoothing_ref(x1, t1, SIZE1, SM1)
    assert jnp.allclose(loss1, ref1, rtol=1e-4, atol=1e-3), (loss1, ref1)

    # Case 2: rows not a multiple of 8 (full-dim single-block path, (1, V) acc).
    N2, SIZE2, SM2 = 10, 256, 0.2
    x2 = jax.nn.log_softmax(jax.random.normal(k3, (N2, SIZE2), jnp.float32), axis=-1)
    t2 = jax.random.randint(k4, (N2,), 0, SIZE2, dtype=jnp.int32)
    loss2 = jax.block_until_ready(label_smoothing_loss(x2, t2, SIZE2, SM2))
    ref2 = label_smoothing_ref(x2, t2, SIZE2, SM2)
    assert jnp.allclose(loss2, ref2, rtol=1e-4, atol=1e-3), (loss2, ref2)

    # Case 3: tiny forced tiles to exercise the multi-block 2-D ("parallel",
    # "arbitrary") grid, the clamped block index, the in-kernel ragged-row mask
    # and the chunked inner loop — all at small shapes.
    N3, SIZE3, SM3 = 40, 128, 0.1
    x3 = jax.nn.log_softmax(jax.random.normal(k5, (N3, SIZE3), jnp.float32), axis=-1)
    t3 = jax.random.randint(k6, (N3,), 0, SIZE3, dtype=jnp.int32)
    loss3 = jax.block_until_ready(
        label_smoothing_loss(x3, t3, SIZE3, SM3,
                             block_budget_bytes=16 * 1024,
                             chunk_budget_bytes=4 * 1024))
    ref3 = label_smoothing_ref(x3, t3, SIZE3, SM3)
    assert jnp.allclose(loss3, ref3, rtol=1e-4, atol=1e-3), (loss3, ref3)

    print("KERNEL_OK")
</pallas_src>

<mosaic_0001>
module attributes {stable_mosaic.version = 11 : i64} {
  func.func @kernel(%arg0: i32, %arg1: i32, %arg2: memref<16x128xf32, #tpu.memory_space<vmem>>, %arg3: memref<16x1xi32, #tpu.memory_space<vmem>>, %arg4: memref<8x128xf32, #tpu.memory_space<vmem>>) attributes {dimension_semantics = [#tpu.dimension_semantics<parallel>, #tpu.dimension_semantics<arbitrary>], iteration_bounds = array<i64: 1, 1>, scalar_prefetch = 0 : i64, scratch_operands = 0 : i64, tpu.core_type = #tpu.core_type<tc>, window_params = [{transform_indices = @transform_0, window_bounds = array<i64: 16, 128>}, {transform_indices = @transform_1, window_bounds = array<i64: 16, 1>}, {transform_indices = @transform_2, window_bounds = array<i64: 8, 128>}]} {
    %c0_i32 = arith.constant 0 : i32
    %0 = arith.cmpi eq, %arg1, %c0_i32 : i32
    %1 = arith.extui %0 : i1 to i32
    %c0_i32_0 = arith.constant 0 : i32
    %2 = arith.cmpi ne, %1, %c0_i32_0 : i32
    scf.if %2 {
      %cst_10 = arith.constant 0.000000e+00 : f32
      %17 = vector.broadcast %cst_10 : f32 to vector<8x128xf32>
      %c0_11 = arith.constant 0 : index
      %c0_12 = arith.constant 0 : index
      %18 = vector.load %arg4[%c0_11, %c0_12] : memref<8x128xf32, #tpu.memory_space<vmem>>, vector<8x128xf32>
      tpu.vector_store %arg4[%c0_11, %c0_12], %17 {strides = array<i32>} : memref<8x128xf32, #tpu.memory_space<vmem>>, vector<8x128xf32>,
    } else {
    }
    %c0 = arith.constant 0 : index
    %c0_1 = arith.constant 0 : index
    %3 = vector.load %arg2[%c0, %c0_1] : memref<16x128xf32, #tpu.memory_space<vmem>>, vector<16x128xf32>
    %c0_2 = arith.constant 0 : index
    %c0_3 = arith.constant 0 : index
    %4 = vector.load %arg3[%c0_2, %c0_3] : memref<16x1xi32, #tpu.memory_space<vmem>>, vector<16x1xi32>
    %5 = tpu.iota {dimensions = array<i32: 1>} : vector<16x128xi32>
    %6 = vector.broadcast %4 : vector<16x1xi32> to vector<16x128xi32>
    %7 = arith.cmpi eq, %5, %6 : vector<16x128xi32>
    %cst = arith.constant 0.899999976 : f32
    %cst_4 = arith.constant 7.93650805E-4 : f32
    %8 = vector.broadcast %cst : f32 to vector<16x128xf32>
    %9 = vector.broadcast %cst_4 : f32 to vector<16x128xf32>
    %10 = arith.select %7, %8, %9 : vector<16x128xi1>, vector<16x128xf32>
    %11 = arith.mulf %10, %3 : vector<16x128xf32>
    %c0_5 = arith.constant 0 : index
    %c0_6 = arith.constant 0 : index
    %12 = vector.load %arg4[%c0_5, %c0_6] : memref<8x128xf32, #tpu.memory_space<vmem>>, vector<8x128xf32>
    %13 = vector.shape_cast %11 : vector<16x128xf32> to vector<2x8x128xf32>
    %cst_7 = arith.constant dense<0.000000e+00> : vector<8x128xf32>
    %14 = vector.multi_reduction <add>, %13, %cst_7 [0] : vector<2x8x128xf32> to vector<8x128xf32>
    %15 = arith.addf %12, %14 : vector<8x128xf32>
    %c0_8 = arith.constant 0 : index
    %c0_9 = arith.constant 0 : index
    %16 = vector.load %arg4[%c0_8, %c0_9] : memref<8x128xf32, #tpu.memory_space<vmem>>, vector<8x128xf32>
    tpu.vector_store %arg4[%c0_8, %c0_9], %15 {strides = array<i32>} : memref<8x128xf32, #tpu.memory_space<vmem>>, vector<8x128xf32>,
    return
  }
  func.func @transform_0(%arg0: i32, %arg1: i32) -> (i32, i32) {
    %c1_i32 = arith.constant 1 : i32
    %0 = arith.muli %arg0, %c1_i32 : i32
    %1 = arith.addi %0, %arg1 : i32
    %c0_i32 = arith.constant 0 : i32
    %2 = arith.minsi %1, %c0_i32 : i32
    %c0_i32_0 = arith.constant 0 : i32
    %c0_i32_1 = arith.constant 0 : i32
    return %2, %c0_i32_0 : i32, i32
  }
  func.func @transform_1(%arg0: i32, %arg1: i32) -> (i32, i32) {
    %c1_i32 = arith.constant 1 : i32
    %0 = arith.muli %arg0, %c1_i32 : i32
    %1 = arith.addi %0, %arg1 : i32
    %c0_i32 = arith.constant 0 : i32
    %2 = arith.minsi %1, %c0_i32 : i32
    %c0_i32_0 = arith.constant 0 : i32
    %c0_i32_1 = arith.constant 0 : i32
    return %2, %c0_i32_0 : i32, i32
  }
  func.func @transform_2(%arg0: i32, %arg1: i32) -> (i32, i32) {
    %c0_i32 = arith.constant 0 : i32
    %c0_i32_0 = arith.constant 0 : i32
    return %arg0, %c0_i32 : i32, i32
  }
}

</mosaic_0001>

<llo_original>
// kernel: tpu_custom_call.1
$region0: #{tpu_custom_call.1}
  #allocation0 [shape = 'u32[]', space=smem, size = 0x4, offset = 0x4, fixed_abs, tag = 'smem constant byte address 0x4 - core index']
  #allocation1 [shape = 'u32[144,128]{1,0:T(1,128)}', space=vmem, size = 0x12000, scoped, tag = 'internal scratch']
  %s0 = inlined_call_operand.vmem [shape: f32[16,128], index: 0, kind: input, shape index: {}]
  %s1 = inlined_call_operand.vmem [shape: s32[16,1], index: 1, kind: input, shape index: {}]
  %s2 = inlined_call_operand.hbm [shape: f32[8,128], index: 2, kind: output, shape index: {}]
  %s3 = sld [smem:[#allocation0]]
  $region22: #{tpu_custom_call.1} parent=0
    _
  %s5 = ssub.s32 1, %s3
  %s6 = scalar_select 0, %s5, %s3
  $region1: #{tpu_custom_call.1} parent=0
    #allocation2 [shape = 'u8[4096]{0}', space=vmem, size = 0x1000, scoped, tag = 'output window, operand 0, single buffered']
    #allocation3 [shape = 's32[1]{0}', space=sflag, size = 0x4, scoped, tag = 'scoped memory for tpu_custom_call.1']
    %7 = vsyncpa [#allocation3], 0
    // Predicated region
    $region2: #{tpu_custom_call.1} parent=1 // pred_check
      _
    $region3: #{tpu_custom_call.1} parent=1 // pred_check_branch
      %9 = sbr.rel (0) target = $region5
    $region4: #{tpu_custom_call.1} parent=1 // pred_region
      %s10 = sadd.s32 0, 0
      %p11 = scmp.lt.s32.totalorder %s10, 0
      %s12 = scalar_select %p11, %s10, 0
      %s13 = smul.u32 2, %s12
      %p14 = scmp.lt.s32.totalorder %s13, 1
      %s15 = scalar_select %p14, %s13, 1
      %s16 = smul.addr %s15, 8
      %s17 = scalar_lea.vmem %s0, %s16
      %s18 = sadd.s32 0, 0
      %p19 = scmp.lt.s32.totalorder %s18, 0
      %s20 = scalar_select %p19, %s18, 0
      %s21 = smul.u32 2, %s20
    $region5: #{tpu_custom_call.1} parent=1 // pred_fallthru
      _
    // Predicated region
    $region6: #{tpu_custom_call.1} parent=1 // pred_check
      _
    $region7: #{tpu_custom_call.1} parent=1 // pred_check_branch
      %23 = sbr.rel (0) target = $region9
    $region8: #{tpu_custom_call.1} parent=1 // pred_region
      %s24 = sadd.s32 0, 0
      %p25 = scmp.lt.s32.totalorder %s24, 0
      %s26 = scalar_select %p25, %s24, 0
      %s27 = smul.u32 2, %s26
      %p28 = scmp.lt.s32.totalorder %s27, 1
      %s29 = scalar_select %p28, %s27, 1
      %s30 = smul.addr %s29, 8
      %s31 = scalar_lea.vmem %s1, %s30
      %s32 = sadd.s32 0, 0
      %p33 = scmp.lt.s32.totalorder %s32, 0
      %s34 = scalar_select %p33, %s32, 0
      %s35 = smul.u32 2, %s34
    $region9: #{tpu_custom_call.1} parent=1 // pred_fallthru
      _
    %s36 = sadd.s32 0, 0
    %p37 = scmp.lt.s32.totalorder %s36, 0
    %s38 = scalar_select %p37, %s36, 0
    %s39 = smul.u32 2, %s38
    %p40 = scmp.lt.s32.totalorder %s39, 1
    %s41 = scalar_select %p40, %s39, 1
    %s42 = smul.addr %s41, 8
    %s43 = scalar_lea.vmem %s0, %s42
    %s44 = sadd.s32 0, 0
    %p45 = scmp.lt.s32.totalorder %s44, 0
    %s46 = scalar_select %p45, %s44, 0
    %s47 = smul.u32 2, %s46
    %p48 = scmp.lt.s32.totalorder %s47, 1
    %s49 = scalar_select %p48, %s47, 1
    %s50 = smul.addr %s49, 8
    %s51 = scalar_lea.vmem %s1, %s50
    %s52 = sadd.s32 0, 0
    %p53 = scmp.lt.s32.totalorder %s52, 0
    %s54 = scalar_select %p53, %s52, 0
    %s55 = smul.u32 2, %s54
    %p56 = scmp.lt.s32.totalorder %s55, 1
    %s57 = scalar_select %p56, %s55, 1
    %s58 = smul.addr %s57, 8
    %s59 = scalar_lea.vmem %s0, %s58
    %s60 = sadd.s32 0, 0
    %p61 = scmp.lt.s32.totalorder %s60, 0
    %s62 = scalar_select %p61, %s60, 0
    %s63 = smul.u32 2, %s62
    %s64 = sadd.s32 0, 0
    %p65 = scmp.lt.s32.totalorder %s64, 0
    %s66 = scalar_select %p65, %s64, 0
    %s67 = smul.u32 2, %s66
    %p68 = scmp.lt.s32.totalorder %s67, 1
    %s69 = scalar_select %p68, %s67, 1
    %s70 = smul.addr %s69, 8
    %s71 = scalar_lea.vmem %s1, %s70
    %s72 = sadd.s32 0, 0
    %p73 = scmp.lt.s32.totalorder %s72, 0
    %s74 = scalar_select %p73, %s72, 0
    %s75 = smul.u32 2, %s74
    %p76 = scmp.eq.s32.totalorder 0, 0
    // Predicated region
    $region10: #{tpu_custom_call.1} parent=1 // pred_check
      %p77 = pneg %p76
    $region11: #{tpu_custom_call.1} parent=1 // pred_check_branch
      %79 = sbr.rel (%p77) target = $region13
    $region12: #{tpu_custom_call.1} parent=1 // pred_region
      %80 = vst [vmem:[#allocation2] sm:$0xff] 0.0
    $region13: #{tpu_custom_call.1} parent=1 // pred_fallthru
      _
    %v81 = vld [vmem:[%s59] sm:$0xff]
    %v82 = vld [vmem:[%s59 + $0x8] sm:$0xff]
    %v83 = vld [vmem:[%s71] sm:$0xff]
    %v84 = vld [vmem:[%s71 + $0x8] sm:$0xff]
    %v85 = vlaneseq
    %v86 = vand.u32 %v85, 127
    %87 = vset.pattern.permute.xlu0 0
    %88 = vperm.xlu0 %87, %v83
    %v89 = vpop.permute.xlu0 %88
    %90 = vset.pattern.permute.xlu0 0
    %91 = vperm.xlu0 %90, %v84
    %v92 = vpop.permute.xlu0 %91
    %vm93 = vcmp.eq.s32.totalorder %v86, %v89
    %vm94 = vcmp.eq.s32.totalorder %v86, %v92
    %v95 = vsel %vm93, 0.9, 0.0007936508
    %v96 = vsel %vm94, 0.9, 0.0007936508
    %v97 = vmul.f32 %v95, %v81
    %v98 = vmul.f32 %v96, %v82
    %v99 = vld [vmem:[#allocation2] sm:$0xff]
    %v100 = vadd.f32 %v97, %v98
    %v101 = vadd.f32 %v99, %v100
    %102 = vst [vmem:[#allocation2] sm:$0xff] %v101
    // Predicated region
    $region14: #{tpu_custom_call.1} parent=1 // pred_check
      _
    $region15: #{tpu_custom_call.1} parent=1 // pred_check_branch
      %104 = sbr.rel (0) target = $region17
    $region16: #{tpu_custom_call.1} parent=1 // pred_region
      %s106 = ssub.s32 128, 128
      %107 = vsyncadd [#allocation3], %s106
      %s109 = sshll.u32 [#allocation2], 4
      %s110 = int_to_ptr.vmem [resolvable:$true] %s109
      %112 = dma.vmem_to_hbm [thread:$0]  %s110, 128, %s2, [#allocation3]
    $region17: #{tpu_custom_call.1} parent=1 // pred_fallthru
      _
    // Predicated region
    $region18: #{tpu_custom_call.1} parent=1 // pred_check
      _
    $region19: #{tpu_custom_call.1} parent=1 // pred_check_branch
      %114 = sbr.rel (0) target = $region21
    $region20: #{tpu_custom_call.1} parent=1 // pred_region
      %115 = dma.done [#allocation3], 128
    $region21: #{tpu_custom_call.1} parent=1 // pred_fallthru
      _
    %116 = vsyncpa [#allocation3], 1

</llo_original>
